<compile_context>
chip_gen: v7x
topology: tpu7x:2x2x1
jax: 0.10.0
libtpu: 0.0.40
codegen_flags: <defaults>
</compile_context>

<pallas_src>
import functools

import numpy as np

import jax
import jax.numpy as jnp
from jax.experimental import pallas as pl
from jax.experimental.pallas import tpu as pltpu


# --------------------------------------------------------------------------- #
# pltpu.roll shift-convention probe (expected to match jnp.roll; pin it once)
# --------------------------------------------------------------------------- #
_ROLL_MATCHES_JNP = None


def _roll_matches_jnp_roll():
    global _ROLL_MATCHES_JNP
    if _ROLL_MATCHES_JNP is None:
        def probe(x_ref, o_ref):
            o_ref[...] = pltpu.roll(x_ref[...], 1, 1)

        x = jax.lax.broadcasted_iota(jnp.int32, (8, 128), 1)
        r = pl.pallas_call(
            probe, out_shape=jax.ShapeDtypeStruct((8, 128), jnp.int32))(x)
        # jnp.roll(x, 1, axis=1)[0, 1] == x[0, 0] == 0
        _ROLL_MATCHES_JNP = bool(int(r[0, 1]) == 0)
    return _ROLL_MATCHES_JNP


# --------------------------------------------------------------------------- #
# Static per-tap halo masks over the flattened image (computed once, host side)
# --------------------------------------------------------------------------- #
@functools.lru_cache(maxsize=None)
def _halo_masks(H, W, KH, KW, pad):
    """mask[tap, h*W + w] = 1 iff the tap's source pixel lies inside the image."""
    h = np.arange(H)[:, None]
    w = np.arange(W)[None, :]
    m = np.zeros((KH * KW, H * W), np.float32)
    t = 0
    for dy in range(KH):
        for dx in range(KW):
            row_ok = (h + dy - pad >= 0) & (h + dy - pad < H)
            col_ok = (w + dx - pad >= 0) & (w + dx - pad < W)
            m[t] = (row_ok & col_ok).astype(np.float32).reshape(-1)
            t += 1
    return m


def _round_up(v, m):
    return -(-v // m) * m


def _derive_vmem_limit(blocks):
    """2x (double buffering) the padded per-step block bytes + headroom."""
    total = 0
    for shape, dtype in blocks:
        itemsize = jnp.dtype(dtype).itemsize
        dims = list(shape)
        if len(dims) >= 2:
            dims[-1] = _round_up(dims[-1], 128)
            dims[-2] = _round_up(dims[-2], max(1, 32 // itemsize))
        n = 1
        for d in dims:
            n *= int(d)
        total += n * itemsize
    limit = 2 * total + 32 * 1024 * 1024
    return int(min(64 * 1024 * 1024, max(32 * 1024 * 1024, limit)))


# --------------------------------------------------------------------------- #
# Fused conv kernel: transposed (Cout, H*W) orientation, roll-based taps
# --------------------------------------------------------------------------- #
def _conv_kernel(H, W, Cin, Cout, KH, KW, pad, roll_is_jnp, has_act, proj_cin,
                 has_res, *refs):
    # refs: x(1,Cin,HW) bf16, w(KH*KW,Cout,Cin) bf16, b(Cout,1) f32,
    #       mask(KH*KW,HW) bf16, [alpha(1,) SMEM f32], [px(1,pcin,HW) bf16,
    #       pw(Cout,pcin) bf16, pb(Cout,1) f32], [res(1,Cout,HW)], out(1,Cout,HW)
    HW = H * W
    x_ref, w_ref, b_ref, m_ref = refs[0], refs[1], refs[2], refs[3]
    i = 4
    if has_act:
        a_ref = refs[i]; i += 1
    if proj_cin:
        px_ref, pw_ref, pb_ref = refs[i], refs[i + 1], refs[i + 2]; i += 3
    if has_res:
        r_ref = refs[i]; i += 1
    o_ref = refs[i]

    x = x_ref[0]                                   # (Cin, HW) bf16
    acc = None
    tap = 0
    for dy in range(KH):                           # static unroll over taps
        for dx in range(KW):
            r = (dy - pad) * W + (dx - pad)        # flat source offset
            if r == 0:
                s = x                              # centre tap: no shift / halo
            else:
                jnp_shift = (-r) % HW              # want s[:, i] = x[:, i + r]
                shift = jnp_shift if roll_is_jnp else (HW - jnp_shift) % HW
                s = pltpu.roll(x, shift, 1)        # XLU lane rotation
                s = s * m_ref[tap:tap + 1, :]      # zero wrapped / halo lanes
            part = jnp.dot(w_ref[tap], s, preferred_element_type=jnp.float32)
            acc = part if acc is None else acc + part
            tap += 1

    y = acc + b_ref[...]                           # (Cout, HW) + (Cout, 1) bias
    if has_act:                                    # PReLU (shared slope, SMEM)
        alpha = a_ref[0]
        y = jnp.where(y >= 0.0, y, alpha * y)
    if proj_cin:                                   # fused 1x1 projection shortcut
        y = y + jnp.dot(pw_ref[...], px_ref[0],
                        preferred_element_type=jnp.float32) + pb_ref[...]
    if has_res:                                    # fused residual / skip add
        y = y + r_ref[0].astype(jnp.float32)
    o_ref[0] = y.astype(o_ref.dtype)


def conv2d_fused(x, w, b, *, H, W, alpha=None, proj=None, residual=None,
                 out_dtype=jnp.bfloat16):
    """Stride-1 'same' Conv2d on flat (N, Cin, H*W) activations with optional
    fused PReLU, fused 1x1 projection shortcut and fused residual add.
    bf16 MXU operands, f32 accumulation/epilogue, lane-dense (Cout, H*W) output."""
    N, Cin, HW = x.shape
    assert HW == H * W
    KH, KW, Cin_w, Cout = w.shape
    assert Cin_w == Cin and KH == KW and KH % 2 == 1
    pad = KH // 2
    KK = KH * KW

    x_bf = x.astype(jnp.bfloat16)
    w_r = jnp.transpose(w, (0, 1, 3, 2)).reshape(KK, Cout, Cin).astype(jnp.bfloat16)
    b_r = b.reshape(Cout, 1).astype(jnp.float32)
    m_r = jnp.asarray(_halo_masks(H, W, KH, KW, pad), dtype=jnp.bfloat16)

    has_act = alpha is not None
    has_res = residual is not None
    proj_cin = 0

    in_specs = [
        pl.BlockSpec((1, Cin, HW), lambda n: (n, 0, 0)),
        pl.BlockSpec((KK, Cout, Cin), lambda n: (0, 0, 0)),
        pl.BlockSpec((Cout, 1), lambda n: (0, 0)),
        pl.BlockSpec((KK, HW), lambda n: (0, 0)),
    ]
    args = [x_bf, w_r, b_r, m_r]

    if has_act:
        in_specs.append(pl.BlockSpec(memory_space=pltpu.MemorySpace.SMEM))
        args.append(jnp.asarray(alpha, dtype=jnp.float32).reshape(1))
    if proj is not None:
        px, ws, bs = proj
        _, _, pcin, pcout = ws.shape
        assert pcout == Cout and px.shape == (N, pcin, HW)
        proj_cin = pcin
        in_specs += [
            pl.BlockSpec((1, pcin, HW), lambda n: (n, 0, 0)),
            pl.BlockSpec((Cout, pcin), lambda n: (0, 0)),
            pl.BlockSpec((Cout, 1), lambda n: (0, 0)),
        ]
        args += [px.astype(jnp.bfloat16),
                 jnp.transpose(ws[0, 0]).astype(jnp.bfloat16),
                 bs.reshape(Cout, 1).astype(jnp.float32)]
    if has_res:
        in_specs.append(pl.BlockSpec((1, Cout, HW), lambda n: (n, 0, 0)))
        args.append(residual)

    kernel = functools.partial(
        _conv_kernel, H, W, Cin, Cout, KH, KW, pad,
        _roll_matches_jnp_roll(), has_act, proj_cin, has_res)

    block_list = [(s.block_shape, a.dtype)
                  for s, a in zip(in_specs, args) if s.block_shape is not None]
    block_list.append(((1, Cout, HW), out_dtype))
    vmem_limit = _derive_vmem_limit(block_list)

    return pl.pallas_call(
        kernel,
        out_shape=jax.ShapeDtypeStruct((N, Cout, HW), out_dtype),
        grid_spec=pltpu.PrefetchScalarGridSpec(
            num_scalar_prefetch=0,
            grid=(N,),
            in_specs=in_specs,
            out_specs=pl.BlockSpec((1, Cout, HW), lambda n: (n, 0, 0)),
        ),
        compiler_params=pltpu.CompilerParams(
            dimension_semantics=("parallel",),
            vmem_limit_bytes=vmem_limit,
        ),
    )(*args)


# --------------------------------------------------------------------------- #
# Plain-JAX glue: bilinear x4 (align_corners=True) and PixelShuffle
# --------------------------------------------------------------------------- #
def bilinear_upsample_x4(x):
    """nn.Upsample(scale_factor=4, mode='bilinear', align_corners=True), NCHW."""
    N, C, H, W = x.shape
    Ho, Wo = 4 * H, 4 * W

    def src(n_in, n_out):
        if n_in == 1:
            return jnp.zeros((n_out,), jnp.float32)
        return jnp.arange(n_out, dtype=jnp.float32) * (n_in - 1) / (n_out - 1)

    ys, xs = src(H, Ho), src(W, Wo)
    y0 = jnp.floor(ys).astype(jnp.int32)
    y1 = jnp.minimum(y0 + 1, H - 1)
    wy = (ys - y0.astype(jnp.float32))[None, None, :, None]
    x0 = jnp.floor(xs).astype(jnp.int32)
    x1 = jnp.minimum(x0 + 1, W - 1)
    wx = (xs - x0.astype(jnp.float32))[None, None, None, :]

    rows = x[:, :, y0, :] * (1.0 - wy) + x[:, :, y1, :] * wy
    return rows[:, :, :, x0] * (1.0 - wx) + rows[:, :, :, x1] * wx


def pixel_shuffle_flat(x, H, W, r):
    """nn.PixelShuffle(r) on flat (N, C*r*r, H*W) -> (N, C, (H*r)*(W*r))."""
    N, C, _ = x.shape
    Co = C // (r * r)
    x = x.reshape(N, Co, r, r, H, W)
    x = x.transpose(0, 1, 4, 2, 5, 3)              # (N, Co, H, ry, W, rx)
    return x.reshape(N, Co, H * r * W * r)


# --------------------------------------------------------------------------- #
# Parameters (deterministic synthetic init) and the model forward
# --------------------------------------------------------------------------- #
def _init_conv(key, kh, kw, cin, cout):
    kw_, kb_ = jax.random.split(key)
    fan_in = kh * kw * cin
    w = jax.random.normal(kw_, (kh, kw, cin, cout), jnp.float32) / jnp.sqrt(float(fan_in))
    b = jax.random.normal(kb_, (cout,), jnp.float32) * 0.01
    return w, b


# TODO(synk): ResNetBlock is not defined in the provided snippet; assumed
#             conv(k) -> PReLU -> conv(k) with a (1x1-conv if channels change,
#             else identity) shortcut.
def _init_resblock(key, cin, cout, k):
    k1, k2, k3 = jax.random.split(key, 3)
    w1, b1 = _init_conv(k1, k, k, cin, cout)
    w2, b2 = _init_conv(k2, k, k, cout, cout)
    if cin != cout:
        ws, bs = _init_conv(k3, 1, 1, cin, cout)
    else:
        ws, bs = None, None
    return dict(w1=w1, b1=b1, w2=w2, b2=b2, alpha=0.25, ws=ws, bs=bs)


def init_params(key):
    keys = jax.random.split(key, 5)
    w0, b0 = _init_conv(keys[0], 7, 7, 3, 16 * 3)          # Conv2d(3, 48, 7, p=3)
    rb1 = _init_resblock(keys[1], 3, 64, 7)
    rb2 = _init_resblock(keys[2], 64, 32, 7)
    rb3 = _init_resblock(keys[3], 32, 32, 7)
    wf, bf = _init_conv(keys[4], 7, 7, 32, 3)              # Conv2d(32, 3, 7, p=3)
    return dict(w0=w0, b0=b0, alpha0=0.25, rb1=rb1, rb2=rb2, rb3=rb3, wf=wf, bf=bf)


def _resnet_block(x, p, *, H, W):
    h = conv2d_fused(x, p["w1"], p["b1"], H=H, W=W, alpha=p["alpha"])
    if p["ws"] is not None:
        # second conv fuses the 7x7 conv, the 1x1 projection of the block input
        # and the residual add into one kernel (no separate pallas_call / HBM add)
        return conv2d_fused(h, p["w2"], p["b2"], H=H, W=W,
                            proj=(x, p["ws"], p["bs"]))
    return conv2d_fused(h, p["w2"], p["b2"], H=H, W=W, residual=x)


def upscale4x(x_nchw, params):
    """forward(x) = bilinear_4x(x) + model(x); NCHW float32 in / out."""
    N, C, H, W = x_nchw.shape
    x = x_nchw.astype(jnp.float32)
    x_flat = x.reshape(N, C, H * W)                        # NCHW flattens for free

    up = bilinear_upsample_x4(x)                           # f32 skip path
    up_flat = up.reshape(N, C, 16 * H * W)

    # Conv2d(3,48,7,p=3) -> PixelShuffle(4) -> PReLU.  The shared-alpha PReLU
    # commutes with the PixelShuffle permutation, so it is fused into the conv
    # epilogue and the shuffle runs afterwards on the small bf16 activation.
    h = conv2d_fused(x_flat, params["w0"], params["b0"], H=H, W=W,
                     alpha=params["alpha0"])
    h = pixel_shuffle_flat(h, H, W, 4)                     # (N, 3, (4H)*(4W)) bf16

    Ho, Wo = 4 * H, 4 * W
    h = _resnet_block(h, params["rb1"], H=Ho, W=Wo)
    h = _resnet_block(h, params["rb2"], H=Ho, W=Wo)
    h = _resnet_block(h, params["rb3"], H=Ho, W=Wo)

    # Final Conv2d(32,3,7,p=3); the bilinear skip add is fused into its epilogue.
    out = conv2d_fused(h, params["wf"], params["bf"], H=Ho, W=Wo,
                       residual=up_flat, out_dtype=jnp.float32)
    return out.reshape(N, C, Ho, Wo)


# --------------------------------------------------------------------------- #
# Pure-JAX float32 reference (validation only)
# --------------------------------------------------------------------------- #
def _ref_conv(x, w, b, pad):
    y = jax.lax.conv_general_dilated(
        x, w, window_strides=(1, 1), padding=[(pad, pad), (pad, pad)],
        dimension_numbers=("NCHW", "HWIO", "NCHW"),
        precision=jax.lax.Precision.HIGHEST)
    return y + b.reshape(1, -1, 1, 1)


def _ref_prelu(x, a):
    return jnp.where(x >= 0, x, a * x)


def _ref_pixel_shuffle(x, r):
    N, C, H, W = x.shape
    Co = C // (r * r)
    x = x.reshape(N, Co, r, r, H, W).transpose(0, 1, 4, 2, 5, 3)
    return x.reshape(N, Co, H * r, W * r)


def _ref_block(x, p):
    k = p["w1"].shape[0]
    skip = x if p["ws"] is None else _ref_conv(x, p["ws"], p["bs"], 0)
    h = _ref_prelu(_ref_conv(x, p["w1"], p["b1"], k // 2), p["alpha"])
    return _ref_conv(h, p["w2"], p["b2"], k // 2) + skip


def upscale4x_reference(x, params):
    up = bilinear_upsample_x4(x)
    h = _ref_conv(x, params["w0"], params["b0"], 3)
    h = _ref_prelu(_ref_pixel_shuffle(h, 4), params["alpha0"])
    h = _ref_block(h, params["rb1"])
    h = _ref_block(h, params["rb2"])
    h = _ref_block(h, params["rb3"])
    return up + _ref_conv(h, params["wf"], params["bf"], 3)


if __name__ == "__main__":
    _roll_matches_jnp_roll()                         # probe once, outside jit

    key = jax.random.PRNGKey(0)
    x = jax.random.normal(key, (2, 3, 16, 16), dtype=jnp.float32)   # NCHW
    params = init_params(jax.random.PRNGKey(1234))

    fwd = jax.jit(upscale4x)
    y = fwd(x, params)
    jax.block_until_ready(y)

    assert y.shape == (2, 3, 64, 64), y.shape
    assert y.dtype == jnp.float32
    assert bool(jnp.all(jnp.isfinite(y)))

    # Validate against a float32 XLA reference (bf16 MXU operands => loose tol).
    y_ref = jax.jit(upscale4x_reference)(x, params)
    err = float(jnp.max(jnp.abs(y - y_ref)))
    scale = float(jnp.max(jnp.abs(y_ref)))
    assert err <= 0.2 * scale + 0.05, ("mismatch vs reference", err, scale)

    print("KERNEL_OK")
</pallas_src>

<mosaic_0001>
module attributes {stable_mosaic.version = 11 : i64} {
  func.func @probe(%arg0: memref<8x128xi32, #tpu.memory_space<vmem>>, %arg1: memref<8x128xi32, #tpu.memory_space<vmem>>) attributes {dimension_semantics = [], scalar_prefetch = 0 : i64, scratch_operands = 0 : i64, tpu.core_type = #tpu.core_type<tc>} {
    %c0 = arith.constant 0 : index
    %c0_0 = arith.constant 0 : index
    %0 = vector.load %arg0[%c0, %c0_0] : memref<8x128xi32, #tpu.memory_space<vmem>>, vector<8x128xi32>
    %c1_i32 = arith.constant 1 : i32
    %1 = tpu.dynamic_rotate %0 by %c1_i32 dim 1 : vector<8x128xi32>, i32 -> vector<8x128xi32>
    %c0_1 = arith.constant 0 : index
    %c0_2 = arith.constant 0 : index
    %2 = vector.load %arg1[%c0_1, %c0_2] : memref<8x128xi32, #tpu.memory_space<vmem>>, vector<8x128xi32>
    tpu.vector_store %arg1[%c0_1, %c0_2], %1 {strides = array<i32>} : memref<8x128xi32, #tpu.memory_space<vmem>>, vector<8x128xi32>,
    return
  }
}

</mosaic_0001>

<llo_original>
// kernel: tpu_custom_call.1
$region0: #{tpu_custom_call.1}
  #allocation0 [shape = 'u32[]', space=smem, size = 0x4, offset = 0x4, fixed_abs, tag = 'smem constant byte address 0x4 - core index']
  #allocation1 [shape = 'u32[144,128]{1,0:T(1,128)}', space=vmem, size = 0x12000, scoped, tag = 'internal scratch']
  %s0 = inlined_call_operand.hbm [shape: s32[8,128], index: 0, kind: input, shape index: {}]
  %s1 = inlined_call_operand.hbm [shape: s32[8,128], index: 1, kind: output, shape index: {}]
  %s2 = sld [smem:[#allocation0]]
  $region18: #{tpu_custom_call.1} parent=0
    _
  %s4 = ssub.s32 1, %s2
  %s5 = scalar_select 0, %s4, %s2
  $region1: #{tpu_custom_call.1} parent=0
    #allocation2 [shape = 'u8[4096]{0}', space=vmem, size = 0x1000, scoped, tag = 'input window, operand 0, single buffered']
    #allocation3 [shape = 's32[1]{0}', space=sflag, size = 0x4, scoped, tag = 'scoped memory for tpu_custom_call.1']
    #allocation4 [shape = 's32[1]{0}', space=sflag, size = 0x4, scoped, tag = 'scoped memory for tpu_custom_call.1']
    #allocation5 [shape = 'u8[4096]{0}', space=vmem, size = 0x1000, scoped, tag = 'output window, operand 0, single buffered']
    %6 = vsyncpa [#allocation3], 0
    %7 = vsyncpa [#allocation4], 0
    // Predicated region
    $region2: #{tpu_custom_call.1} parent=1 // pred_check
      _
    $region3: #{tpu_custom_call.1} parent=1 // pred_check_branch
      %9 = sbr.rel (0) target = $region5
    $region4: #{tpu_custom_call.1} parent=1 // pred_region
      %s11 = ssub.s32 128, 128
      %12 = vsyncadd [#allocation3], %s11
      %s14 = sshll.u32 [#allocation2], 4
      %s15 = int_to_ptr.vmem [resolvable:$true] %s14
      %17 = dma.hbm_to_vmem [thread:$0]  %s0, 128, %s15, [#allocation3]
    $region5: #{tpu_custom_call.1} parent=1 // pred_fallthru
      _
    // Predicated region
    $region6: #{tpu_custom_call.1} parent=1 // pred_check
      _
    $region7: #{tpu_custom_call.1} parent=1 // pred_check_branch
      %19 = sbr.rel (0) target = $region9
    $region8: #{tpu_custom_call.1} parent=1 // pred_region
      %20 = dma.done [#allocation3], 128
    $region9: #{tpu_custom_call.1} parent=1 // pred_fallthru
      _
    %v21 = vld [vmem:[#allocation2] sm:$0xff]
    %22 = vrot.lane.b32.xlu0 %v21, 1
    %v23 = vpop.permute.xlu0 %22
    %24 = vst [vmem:[#allocation5] sm:$0xff] %v23
    // Predicated region
    $region10: #{tpu_custom_call.1} parent=1 // pred_check
      _
    $region11: #{tpu_custom_call.1} parent=1 // pred_check_branch
      %26 = sbr.rel (0) target = $region13
    $region12: #{tpu_custom_call.1} parent=1 // pred_region
      %s28 = ssub.s32 128, 128
      %29 = vsyncadd [#allocation4], %s28
      %s31 = sshll.u32 [#allocation5], 4
      %s32 = int_to_ptr.vmem [resolvable:$true] %s31
      %34 = dma.vmem_to_hbm [thread:$0]  %s32, 128, %s1, [#allocation4]
    $region13: #{tpu_custom_call.1} parent=1 // pred_fallthru
      _
    // Predicated region
    $region14: #{tpu_custom_call.1} parent=1 // pred_check
      _
    $region15: #{tpu_custom_call.1} parent=1 // pred_check_branch
      %36 = sbr.rel (0) target = $region17
    $region16: #{tpu_custom_call.1} parent=1 // pred_region
      %37 = dma.done [#allocation4], 128
    $region17: #{tpu_custom_call.1} parent=1 // pred_fallthru
      _
    %38 = vsyncpa [#allocation3], 1
    %39 = vsyncpa [#allocation4], 1

</llo_original>
